<compile_context>
chip_gen: v7x
topology: tpu7x:2x2x1
jax: 0.10.0
libtpu: 0.0.40
codegen_flags: <defaults>
</compile_context>

<pallas_src>
import jax
import jax.numpy as jnp
from jax.experimental import pallas as pl
from jax.experimental.pallas import tpu as pltpu

_LANE = 128                              # vreg lane width (fast axis)
_SUBLANE = 8                             # sublane granularity for chunk alignment
_MAX_DMA_CHUNKS = 8                      # max concurrently outstanding DMAs
_CHUNK_THRESHOLD_BYTES = 4 * 1024 * 1024  # only chunk arrays >= 4 MiB


def _make_copy_kernel(chunk_bounds):
    """Build an HBM->HBM DMA copy kernel.

    chunk_bounds: None -> single whole-ref DMA; otherwise a static list of
    (start_row, n_rows) slices along dim 0, each copied by its own DMA so the
    transfers overlap across DMA engines.
    Returns (kernel, semaphore scratch spec).
    """
    if chunk_bounds is None:
        def kernel(x_hbm, o_hbm, sem):
            cp = pltpu.make_async_copy(x_hbm, o_hbm, sem)
            cp.start()
            cp.wait()
        return kernel, pltpu.SemaphoreType.DMA(())

    n_chunks = len(chunk_bounds)

    def kernel(x_hbm, o_hbm, sems):
        copies = []
        # Start all chunk DMAs first (overlap), then wait for all of them.
        for idx, (start, size) in enumerate(chunk_bounds):
            cp = pltpu.make_async_copy(
                x_hbm.at[pl.ds(start, size)],
                o_hbm.at[pl.ds(start, size)],
                sems.at[idx],
            )
            cp.start()
            copies.append(cp)
        for cp in copies:
            cp.wait()

    return kernel, pltpu.SemaphoreType.DMA((n_chunks,))


def _dma_identity_copy(x: jax.Array, chunk_bounds) -> jax.Array:
    nbytes = x.size * jnp.dtype(x.dtype).itemsize
    kernel, sem_spec = _make_copy_kernel(chunk_bounds)
    return pl.pallas_call(
        kernel,
        out_shape=jax.ShapeDtypeStruct(x.shape, x.dtype),
        in_specs=[pl.BlockSpec(memory_space=pl.ANY)],
        out_specs=pl.BlockSpec(memory_space=pl.ANY),
        scratch_shapes=[sem_spec],
        cost_estimate=pl.CostEstimate(
            flops=0, transcendentals=0, bytes_accessed=2 * nbytes
        ),
    )(x)


def encoder_forward(x: jax.Array) -> jax.Array:
    """Pallas equivalent of Encoder.forward (abstract -> identity pass-through).

    Copies the input via direct HBM->HBM DMA (no VMEM bounce).  Lane-dense
    inputs large enough to matter are split into up to 8 parallel DMAs.
    """
    orig_shape = x.shape
    total = x.size
    nbytes = total * jnp.dtype(x.dtype).itemsize

    if total > 0 and total % _LANE == 0:
        # Lane-dense (rows, 128) view of the same bytes (free reshape in XLA).
        rows = total // _LANE
        x2 = x.reshape(rows, _LANE)

        chunk_bounds = None
        if nbytes >= _CHUNK_THRESHOLD_BYTES and rows >= _MAX_DMA_CHUNKS * _SUBLANE:
            n_chunks = _MAX_DMA_CHUNKS
            base = max(_SUBLANE, ((rows // n_chunks) // _SUBLANE) * _SUBLANE)
            chunk_bounds = []
            start = 0
            for i in range(n_chunks):
                size = (rows - start) if i == n_chunks - 1 else min(base, rows - start)
                if size <= 0:
                    break
                chunk_bounds.append((start, size))
                start += size

        y2 = _dma_identity_copy(x2, chunk_bounds)
        return y2.reshape(orig_shape)

    # General / ragged shapes (element count not a multiple of 128): a raw
    # HBM->HBM DMA has no (8,128) constraint and no VMEM footprint.
    return _dma_identity_copy(x, None)


if __name__ == "__main__":
    key = jax.random.PRNGKey(0)
    k0, k1 = jax.random.split(key)

    # Small NCHW input consistent with a conv-style Encoder: batch=2, ch=4, 16x16.
    x = jax.random.normal(k0, (2, 4, 16, 16), dtype=jnp.float32)
    y = encoder_forward(x)
    jax.block_until_ready(y)
    assert y.shape == x.shape and y.dtype == x.dtype
    assert bool(jnp.allclose(y, x)), "identity pass-through mismatch"

    # Ragged (non-128-multiple) shape exercises the general-shape DMA path.
    x2 = jax.random.normal(k1, (3, 5, 7), dtype=jnp.float32)
    y2 = encoder_forward(x2)
    jax.block_until_ready(y2)
    assert y2.shape == x2.shape and y2.dtype == x2.dtype
    assert bool(jnp.allclose(y2, x2)), "identity pass-through mismatch (ragged)"

    print("KERNEL_OK")
</pallas_src>

<mosaic_0001>
module attributes {stable_mosaic.version = 11 : i64} {
  func.func @kernel(%arg0: memref<16x128xf32, #tpu.memory_space<any>>, %arg1: memref<16x128xf32, #tpu.memory_space<any>>, %arg2: memref<!tpu.dma_semaphore, #tpu.memory_space<semaphore_mem>>) attributes {dimension_semantics = [], scalar_prefetch = 0 : i64, scratch_operands = 1 : i64, tpu.core_type = #tpu.core_type<tc>} {
    tpu.enqueue_dma source(%arg0 : memref<16x128xf32, #tpu.memory_space<any>>) target(%arg1 : memref<16x128xf32, #tpu.memory_space<any>>) target_semaphore(%arg2 : memref<!tpu.dma_semaphore, #tpu.memory_space<semaphore_mem>>)
    tpu.wait_dma2 semaphore(%arg2 : memref<!tpu.dma_semaphore, #tpu.memory_space<semaphore_mem>>) src(%arg0 : memref<16x128xf32, #tpu.memory_space<any>>) dst(%arg1 : memref<16x128xf32, #tpu.memory_space<any>>)
    return
  }
}

</mosaic_0001>

<llo_original>
// kernel: tpu_custom_call.1
$region0: #{tpu_custom_call.1}
  #allocation0 [shape = 'u32[]', space=smem, size = 0x4, offset = 0x4, fixed_abs, tag = 'smem constant byte address 0x4 - core index']
  #allocation1 [shape = 'u32[144,128]{1,0:T(1,128)}', space=vmem, size = 0x12000, scoped, tag = 'internal scratch']
  #allocation2 [shape = 's32[1]{0}', space=sflag, size = 0x4, scoped, tag = 'scratch operand']
  #allocation3 [shape = 's32[]', space=sflag, size = 0x4, offset = 0, fixed_abs, tag = 'sflag constant byte address 0x0 - dummy sync flag']
  #allocation4 [shape = 'u32[0]{0}', space=smem, size = 0, offset = 0, fixed_abs, tag = 'smem constant byte address 0x0 - null']
  %s0 = inlined_call_operand.hbm [shape: f32[16,128], index: 0, kind: input, shape index: {}]
  %s1 = inlined_call_operand.hbm [shape: f32[16,128], index: 1, kind: output, shape index: {}]
  %s2 = sld [smem:[#allocation0]]
  $region2: #{tpu_custom_call.1} parent=0
    _
  %s4 = ssub.s32 1, %s2
  %s5 = scalar_select 0, %s4, %s2
  %s7 = sshll.u32 1, 14
  %s8 = sxor.u32 4294967295, %s7
  %s11 = sshll.u32 3, 24
  %s12 = sxor.u32 4294967295, %s11
  %s13 = sand.u32 0, %s12
  %s15 = sor.u32 %s13, 0
  %18 = dma.general %s0, 256, %s1, [#allocation2], [#allocation3], [#allocation4], %s15, 0
  %s19 = smul.u32 16, 1
  %s20 = sshll.u32 %s19, 4
  %21 = dma.done [#allocation2], %s20
  %22 = vsyncmov [#allocation2]
  %s23 = vpop.sfrf %22
  %p24 = scmp.eq.s32.totalorder %s23, 0
  %p25 = pneg %p24
  %27 = shalt.err (%p25)

</llo_original>
